<compile_context>
chip_gen: v7x
topology: tpu7x:2x2x1
jax: 0.10.0
libtpu: 0.0.40
codegen_flags: <defaults>
</compile_context>

<pallas_src>
import jax
import jax.numpy as jnp
from jax.experimental import pallas as pl
from jax.experimental.pallas import tpu as pltpu

# configs.wDX / wLB / wC / use_scost (deterministic, use_scost=False -> rc costs)
W_DX = 1.0
W_LB = 0.5
W_C = 0.25

_LANE = 128
_SUBLANE = 8


def _lab_outcome_kernel(xprev_ref, xpost_ref, ttl_ref, costs_ref, out_ref):
    f32 = jnp.float32
    # Native-dtype DMA; cast on the VPU inside the kernel (review item #2).
    # |mean_T(prev) - mean_T(post)| == |mean_T(prev - post)|: subtract first so
    # only ONE cross-sublane (XLU) reduction over time is needed.
    diff = xprev_ref[...].astype(f32) - xpost_ref[...].astype(f32)   # (TB, T, F)
    varm = jnp.abs(jnp.mean(diff, axis=1))                           # (TB, F)

    t = ttl_ref[0]            # (TB, F)  (lanes >= Y are zero-padded)
    tup = ttl_ref[1]          # (TB, F)
    tlow = ttl_ref[2]         # (TB, F)
    costs = costs_ref[...]    # (1, F)   (lanes >= Y are zero)

    thisorder = jax.nn.sigmoid((t - 0.5) * 1000.0)                   # soft step, as in torch
    # varr (epmax/epmin) is identically zero in the reference; omitted.
    # Hard order mask folded into a single where (review VPU cleanup).
    eachval = jnp.sum(jnp.where(t > 0.5, varm * thisorder, 0.0),
                      axis=1, keepdims=True)                         # (TB, 1)
    eachb = jnp.sum(jnp.where(tup == tlow, jnp.abs(t - tlow), 0.0),
                    axis=1, keepdims=True)                           # (TB, 1)
    cost = jnp.sum(thisorder * costs, axis=1, keepdims=True)         # (TB, 1)
    labvar = eachval * W_DX - eachb * W_LB - cost * W_C               # (TB, 1)

    # Single lane-dense output tile: lane 0 = labvar, 1 = eachval, 2 = eachb,
    # 3 = cost, rest zero -> one unmasked vst instead of four masked stores.
    lane = jax.lax.broadcasted_iota(jnp.int32, out_ref.shape, 1)
    out_ref[...] = (jnp.where(lane == 0, labvar, 0.0)
                    + jnp.where(lane == 1, eachval, 0.0)
                    + jnp.where(lane == 2, eachb, 0.0)
                    + jnp.where(lane == 3, cost, 0.0))


def lab_outcome_forward(xprev, xpost, t, tup, tlow, costs):
    """Pallas equivalent of LabOutcome.forward (lab2idx == identity map)."""
    B, T, F = xprev.shape
    Y = t.shape[1]
    # Identity lab2idx assumption: lab i -> feature i.  Any other mapping would
    # require a gather; assert so it can't silently mis-index.
    assert Y <= F, "identity lab2idx requires the first Y features to be the labs"

    f32 = jnp.float32
    itemsize = jnp.dtype(xprev.dtype).itemsize
    row_bytes = max(1, T * F * itemsize)

    # Batch tile: multiple of 8 sublanes, targeting ~4 MiB per X block so
    # 2 inputs x 2 pipeline buffers stay ~16 MiB (fits the explicit 32 MiB
    # vmem limit on v5e/v6e/v7x while amortizing the ~0.35 us/step overhead).
    budget = 4 << 20
    tb = max(_SUBLANE, (budget // row_bytes) // _SUBLANE * _SUBLANE)
    # TODO(synk): if even an 8-row block (8*T*F*itemsize) blows the VMEM budget
    # (very large T*F), add an inner reduction grid axis over T with a VMEM
    # accumulator instead of a single full-T block.
    if B <= tb:
        tb = B            # single grid step; no padding of any array needed
        grid_b = 1
    else:
        grid_b = pl.cdiv(B, tb)
    bpad = grid_b * tb

    # Only the TINY per-lab tensors get a wrapper repack: one (3, bpad, F) slab
    # (single DMA stream), zero-padded on lanes Y..F-1 (exactly masks the raw
    # X feature tail) and on batch rows B..bpad-1 (keeps discarded rows inert).
    # The dominant Xprev/Xpost streams are passed through untouched.
    ttl_p = jnp.pad(jnp.stack([t, tup, tlow]).astype(f32),
                    ((0, 0), (0, bpad - B), (0, F - Y)))
    costs_p = jnp.pad(jnp.asarray(costs, f32).reshape(1, Y), ((0, 0), (0, F - Y)))

    out = pl.pallas_call(
        _lab_outcome_kernel,
        out_shape=jax.ShapeDtypeStruct((bpad, _LANE), f32),
        grid_spec=pltpu.PrefetchScalarGridSpec(
            num_scalar_prefetch=0,
            grid=(grid_b,),
            in_specs=[
                pl.BlockSpec((tb, T, F), lambda i: (i, 0, 0)),   # raw Xprev
                pl.BlockSpec((tb, T, F), lambda i: (i, 0, 0)),   # raw Xpost
                pl.BlockSpec((3, tb, F), lambda i: (0, i, 0)),   # packed t/tup/tlow
                pl.BlockSpec((1, F), lambda i: (0, 0)),          # costs
            ],
            out_specs=pl.BlockSpec((tb, _LANE), lambda i: (i, 0)),
        ),
        compiler_params=pltpu.CompilerParams(
            # batch axis is independent -> "parallel"; on v7x consider
            # pltpu.CORE_PARALLEL if xprof shows a single active TensorCore.
            dimension_semantics=("parallel",),
            vmem_limit_bytes=32 * 1024 * 1024,
        ),
    )(xprev, xpost, ttl_p, costs_p)

    labvar = out[:B, 0]
    # np.average over the batch in the reference -> one fused device-side mean.
    # TODO(synk): reference returns python floats via .item(); we return a
    # device array (eachval_mean, eachb_mean, cost_mean) to avoid host pulls.
    stats = jnp.mean(out[:B, 1:4], axis=0)
    return labvar, stats


if __name__ == "__main__":
    key = jax.random.PRNGKey(0)
    B, T, F, Y = 2, 8, 16, 10   # batch, time, features, number of labs (== len(costs))
    k1, k2, k3, k4, k5 = jax.random.split(key, 5)

    Xprev = jax.random.normal(k1, (B, T, F), jnp.float32)
    Xpost = jax.random.normal(k2, (B, T, F), jnp.float32)
    t = jax.random.uniform(k3, (B, Y), jnp.float32)                     # order logits in [0,1]
    tup = (jax.random.uniform(k4, (B, Y)) > 0.5).astype(jnp.float32)    # upper-bound flags
    tlow = (jax.random.uniform(k5, (B, Y)) > 0.5).astype(jnp.float32)   # lower-bound flags

    # costs from the module's __init__ (use_scost = False)
    rc = [12, 5, 12.36, 18, 9.1, 10, 18.62, 1.5, 18, 1.5]
    costs = jnp.array([i / sum(rc) for i in rc], jnp.float32)

    # lab2idx = {i: [i] for i in range(Y)}  (identity mapping, len == len(costs))
    labvar, stats = lab_outcome_forward(Xprev, Xpost, t, tup, tlow, costs)
    jax.block_until_ready((labvar, stats))
    print("KERNEL_OK")
</pallas_src>

<mosaic_0001>
module attributes {stable_mosaic.version = 11 : i64} {
  func.func @_lab_outcome_kernel(%arg0: i32, %arg1: memref<2x8x16xf32, #tpu.memory_space<vmem>>, %arg2: memref<2x8x16xf32, #tpu.memory_space<vmem>>, %arg3: memref<3x2x16xf32, #tpu.memory_space<vmem>>, %arg4: memref<1x16xf32, #tpu.memory_space<vmem>>, %arg5: memref<2x128xf32, #tpu.memory_space<vmem>>) attributes {dimension_semantics = [#tpu.dimension_semantics<parallel>], iteration_bounds = array<i64: 1>, scalar_prefetch = 0 : i64, scratch_operands = 0 : i64, tpu.core_type = #tpu.core_type<tc>, window_params = [{transform_indices = @transform_0, window_bounds = array<i64: 2, 8, 16>}, {transform_indices = @transform_1, window_bounds = array<i64: 2, 8, 16>}, {transform_indices = @transform_2, window_bounds = array<i64: 3, 2, 16>}, {pipeline_mode = #tpu.pipeline_mode<synchronous>, transform_indices = @transform_3, window_bounds = array<i64: 1, 16>}, {transform_indices = @transform_4, window_bounds = array<i64: 2, 128>}]} {
    %c0 = arith.constant 0 : index
    %c0_0 = arith.constant 0 : index
    %c0_1 = arith.constant 0 : index
    %0 = vector.load %arg1[%c0, %c0_0, %c0_1] : memref<2x8x16xf32, #tpu.memory_space<vmem>>, vector<2x8x16xf32>
    %c0_2 = arith.constant 0 : index
    %c0_3 = arith.constant 0 : index
    %c0_4 = arith.constant 0 : index
    %1 = vector.load %arg2[%c0_2, %c0_3, %c0_4] : memref<2x8x16xf32, #tpu.memory_space<vmem>>, vector<2x8x16xf32>
    %2 = arith.subf %0, %1 : vector<2x8x16xf32>
    %cst = arith.constant dense<0.000000e+00> : vector<2x16xf32>
    %3 = vector.multi_reduction <add>, %2, %cst [1] : vector<2x8x16xf32> to vector<2x16xf32>
    %cst_5 = arith.constant 8.000000e+00 : f32
    %4 = vector.broadcast %cst_5 : f32 to vector<2x16xf32>
    %5 = arith.divf %3, %4 : vector<2x16xf32>
    %6 = math.absf %5 : vector<2x16xf32>
    %c0_6 = arith.constant 0 : index
    %c0_7 = arith.constant 0 : index
    %c0_8 = arith.constant 0 : index
    %7 = vector.load %arg3[%c0_6, %c0_7, %c0_8] : memref<3x2x16xf32, #tpu.memory_space<vmem>>, vector<1x2x16xf32>
    %8 = vector.shape_cast %7 : vector<1x2x16xf32> to vector<2x16xf32>
    %c1 = arith.constant 1 : index
    %c0_9 = arith.constant 0 : index
    %c0_10 = arith.constant 0 : index
    %9 = vector.load %arg3[%c1, %c0_9, %c0_10] : memref<3x2x16xf32, #tpu.memory_space<vmem>>, vector<1x2x16xf32>
    %10 = vector.shape_cast %9 : vector<1x2x16xf32> to vector<2x16xf32>
    %c2 = arith.constant 2 : index
    %c0_11 = arith.constant 0 : index
    %c0_12 = arith.constant 0 : index
    %11 = vector.load %arg3[%c2, %c0_11, %c0_12] : memref<3x2x16xf32, #tpu.memory_space<vmem>>, vector<1x2x16xf32>
    %12 = vector.shape_cast %11 : vector<1x2x16xf32> to vector<2x16xf32>
    %c0_13 = arith.constant 0 : index
    %c0_14 = arith.constant 0 : index
    %13 = vector.load %arg4[%c0_13, %c0_14] : memref<1x16xf32, #tpu.memory_space<vmem>>, vector<1x16xf32>
    %cst_15 = arith.constant 5.000000e-01 : f32
    %14 = vector.broadcast %cst_15 : f32 to vector<2x16xf32>
    %15 = arith.subf %8, %14 : vector<2x16xf32>
    %cst_16 = arith.constant 1.000000e+03 : f32
    %16 = vector.broadcast %cst_16 : f32 to vector<2x16xf32>
    %17 = arith.mulf %15, %16 : vector<2x16xf32>
    %18 = arith.negf %17 : vector<2x16xf32>
    %19 = math.exp %18 : vector<2x16xf32>
    %cst_17 = arith.constant 1.000000e+00 : f32
    %20 = vector.broadcast %cst_17 : f32 to vector<2x16xf32>
    %21 = arith.addf %20, %19 : vector<2x16xf32>
    %22 = arith.divf %20, %21 : vector<2x16xf32>
    %cst_18 = arith.constant 5.000000e-01 : f32
    %23 = vector.broadcast %cst_18 : f32 to vector<2x16xf32>
    %24 = arith.cmpf ogt, %8, %23 : vector<2x16xf32>
    %25 = arith.mulf %6, %22 : vector<2x16xf32>
    %cst_19 = arith.constant 0.000000e+00 : f32
    %26 = vector.broadcast %cst_19 : f32 to vector<2x16xf32>
    %27 = arith.select %24, %25, %26 : vector<2x16xi1>, vector<2x16xf32>
    %cst_20 = arith.constant dense<0.000000e+00> : vector<2xf32>
    %28 = vector.multi_reduction <add>, %27, %cst_20 [1] : vector<2x16xf32> to vector<2xf32>
    %29 = vector.shape_cast %28 : vector<2xf32> to vector<2x1xf32>
    %30 = arith.cmpf oeq, %10, %12 : vector<2x16xf32>
    %31 = arith.subf %8, %12 : vector<2x16xf32>
    %32 = math.absf %31 : vector<2x16xf32>
    %cst_21 = arith.constant 0.000000e+00 : f32
    %33 = vector.broadcast %cst_21 : f32 to vector<2x16xf32>
    %34 = arith.select %30, %32, %33 : vector<2x16xi1>, vector<2x16xf32>
    %cst_22 = arith.constant dense<0.000000e+00> : vector<2xf32>
    %35 = vector.multi_reduction <add>, %34, %cst_22 [1] : vector<2x16xf32> to vector<2xf32>
    %36 = vector.shape_cast %35 : vector<2xf32> to vector<2x1xf32>
    %37 = vector.broadcast %13 : vector<1x16xf32> to vector<2x16xf32>
    %38 = arith.mulf %22, %37 : vector<2x16xf32>
    %cst_23 = arith.constant dense<0.000000e+00> : vector<2xf32>
    %39 = vector.multi_reduction <add>, %38, %cst_23 [1] : vector<2x16xf32> to vector<2xf32>
    %40 = vector.shape_cast %39 : vector<2xf32> to vector<2x1xf32>
    %cst_24 = arith.constant 1.000000e+00 : f32
    %41 = vector.broadcast %cst_24 : f32 to vector<2x1xf32>
    %42 = arith.mulf %29, %41 : vector<2x1xf32>
    %cst_25 = arith.constant 5.000000e-01 : f32
    %43 = vector.broadcast %cst_25 : f32 to vector<2x1xf32>
    %44 = arith.mulf %36, %43 : vector<2x1xf32>
    %45 = arith.subf %42, %44 : vector<2x1xf32>
    %cst_26 = arith.constant 2.500000e-01 : f32
    %46 = vector.broadcast %cst_26 : f32 to vector<2x1xf32>
    %47 = arith.mulf %40, %46 : vector<2x1xf32>
    %48 = arith.subf %45, %47 : vector<2x1xf32>
    %49 = tpu.iota {dimensions = array<i32: 1>} : vector<2x128xi32>
    %c0_i32 = arith.constant 0 : i32
    %50 = vector.broadcast %c0_i32 : i32 to vector<2x128xi32>
    %51 = arith.cmpi eq, %49, %50 : vector<2x128xi32>
    %cst_27 = arith.constant 0.000000e+00 : f32
    %52 = vector.shape_cast %48 : vector<2x1xf32> to vector<2x1xf32>
    %53 = vector.broadcast %52 : vector<2x1xf32> to vector<2x128xf32>
    %54 = vector.broadcast %cst_27 : f32 to vector<2x128xf32>
    %55 = arith.select %51, %53, %54 : vector<2x128xi1>, vector<2x128xf32>
    %c1_i32 = arith.constant 1 : i32
    %56 = vector.broadcast %c1_i32 : i32 to vector<2x128xi32>
    %57 = arith.cmpi eq, %49, %56 : vector<2x128xi32>
    %cst_28 = arith.constant 0.000000e+00 : f32
    %58 = vector.shape_cast %29 : vector<2x1xf32> to vector<2x1xf32>
    %59 = vector.broadcast %58 : vector<2x1xf32> to vector<2x128xf32>
    %60 = vector.broadcast %cst_28 : f32 to vector<2x128xf32>
    %61 = arith.select %57, %59, %60 : vector<2x128xi1>, vector<2x128xf32>
    %62 = arith.addf %55, %61 : vector<2x128xf32>
    %c2_i32 = arith.constant 2 : i32
    %63 = vector.broadcast %c2_i32 : i32 to vector<2x128xi32>
    %64 = arith.cmpi eq, %49, %63 : vector<2x128xi32>
    %cst_29 = arith.constant 0.000000e+00 : f32
    %65 = vector.shape_cast %36 : vector<2x1xf32> to vector<2x1xf32>
    %66 = vector.broadcast %65 : vector<2x1xf32> to vector<2x128xf32>
    %67 = vector.broadcast %cst_29 : f32 to vector<2x128xf32>
    %68 = arith.select %64, %66, %67 : vector<2x128xi1>, vector<2x128xf32>
    %69 = arith.addf %62, %68 : vector<2x128xf32>
    %c3_i32 = arith.constant 3 : i32
    %70 = vector.broadcast %c3_i32 : i32 to vector<2x128xi32>
    %71 = arith.cmpi eq, %49, %70 : vector<2x128xi32>
    %cst_30 = arith.constant 0.000000e+00 : f32
    %72 = vector.shape_cast %40 : vector<2x1xf32> to vector<2x1xf32>
    %73 = vector.broadcast %72 : vector<2x1xf32> to vector<2x128xf32>
    %74 = vector.broadcast %cst_30 : f32 to vector<2x128xf32>
    %75 = arith.select %71, %73, %74 : vector<2x128xi1>, vector<2x128xf32>
    %76 = arith.addf %69, %75 : vector<2x128xf32>
    %c0_31 = arith.constant 0 : index
    %c0_32 = arith.constant 0 : index
    %77 = vector.load %arg5[%c0_31, %c0_32] : memref<2x128xf32, #tpu.memory_space<vmem>>, vector<2x128xf32>
    tpu.vector_store %arg5[%c0_31, %c0_32], %76 {strides = array<i32>} : memref<2x128xf32, #tpu.memory_space<vmem>>, vector<2x128xf32>,
    return
  }
  func.func @transform_0(%arg0: i32) -> (i32, i32, i32) {
    %c0_i32 = arith.constant 0 : i32
    %c0_i32_0 = arith.constant 0 : i32
    %c0_i32_1 = arith.constant 0 : i32
    return %arg0, %c0_i32, %c0_i32_0 : i32, i32, i32
  }
  func.func @transform_1(%arg0: i32) -> (i32, i32, i32) {
    %c0_i32 = arith.constant 0 : i32
    %c0_i32_0 = arith.constant 0 : i32
    %c0_i32_1 = arith.constant 0 : i32
    return %arg0, %c0_i32, %c0_i32_0 : i32, i32, i32
  }
  func.func @transform_2(%arg0: i32) -> (i32, i32, i32) {
    %c0_i32 = arith.constant 0 : i32
    %c0_i32_0 = arith.constant 0 : i32
    %c0_i32_1 = arith.constant 0 : i32
    return %c0_i32, %arg0, %c0_i32_0 : i32, i32, i32
  }
  func.func @transform_3(%arg0: i32) -> (i32, i32) {
    %c0_i32 = arith.constant 0 : i32
    %c0_i32_0 = arith.constant 0 : i32
    %c0_i32_1 = arith.constant 0 : i32
    return %c0_i32, %c0_i32_0 : i32, i32
  }
  func.func @transform_4(%arg0: i32) -> (i32, i32) {
    %c0_i32 = arith.constant 0 : i32
    %c0_i32_0 = arith.constant 0 : i32
    return %arg0, %c0_i32 : i32, i32
  }
}

</mosaic_0001>

<llo_original>
// kernel: tpu_custom_call.1
$region0: #{tpu_custom_call.1}
  #allocation0 [shape = 'u32[]', space=smem, size = 0x4, offset = 0x4, fixed_abs, tag = 'smem constant byte address 0x4 - core index']
  #allocation1 [shape = 'u32[144,128]{1,0:T(1,128)}', space=vmem, size = 0x12000, scoped, tag = 'internal scratch']
  %s0 = inlined_call_operand.hbm [shape: f32[2,8,16], index: 0, kind: input, shape index: {}]
  %s1 = inlined_call_operand.hbm [shape: f32[2,8,16], index: 1, kind: input, shape index: {}]
  %s2 = inlined_call_operand.vmem [shape: f32[3,2,16], index: 2, kind: input, shape index: {}]
  %s3 = inlined_call_operand.vmem [shape: f32[1,16], index: 3, kind: input, shape index: {}]
  %s4 = inlined_call_operand.hbm [shape: f32[2,128], index: 4, kind: output, shape index: {}]
  %s5 = sld [smem:[#allocation0]]
  $region34: #{tpu_custom_call.1} parent=0
    _
  %s7 = ssub.s32 1, %s5
  %s8 = scalar_select 0, %s7, %s5
  $region1: #{tpu_custom_call.1} parent=0
    #allocation2 [shape = 'u8[8192]{0}', space=vmem, size = 0x2000, scoped, tag = 'input window, operand 0, single buffered']
    #allocation3 [shape = 's32[1]{0}', space=sflag, size = 0x4, scoped, tag = 'scoped memory for tpu_custom_call.1']
    #allocation4 [shape = 's32[1]{0}', space=sflag, size = 0x4, scoped, tag = 'scoped memory for tpu_custom_call.1']
    #allocation5 [shape = 'u8[8192]{0}', space=vmem, size = 0x2000, scoped, tag = 'input window, operand 1, single buffered']
    #allocation6 [shape = 's32[1]{0}', space=sflag, size = 0x4, scoped, tag = 'scoped memory for tpu_custom_call.1']
    #allocation7 [shape = 'u8[1024]{0}', space=vmem, size = 0x400, scoped, tag = 'output window, operand 0, single buffered']
    %9 = vsyncpa [#allocation3], 0
    %10 = vsyncpa [#allocation6], 0
    %11 = vsyncpa [#allocation4], 0
    // Predicated region
    $region2: #{tpu_custom_call.1} parent=1 // pred_check
      _
    $region3: #{tpu_custom_call.1} parent=1 // pred_check_branch
      %13 = sbr.rel (0) target = $region5
    $region4: #{tpu_custom_call.1} parent=1 // pred_region
      %s15 = ssub.s32 256, 256
      %16 = vsyncadd [#allocation3], %s15
      %s17 = sshll.u32 [#allocation2], 4
      %s18 = int_to_ptr.vmem [resolvable:$true] %s17
      %23 = dma.hbm_to_vmem [thread:$0]  %s0, 256, %s18, [#allocation3], 128, 128, 8
    $region5: #{tpu_custom_call.1} parent=1 // pred_fallthru
      _
    // Predicated region
    $region6: #{tpu_custom_call.1} parent=1 // pred_check
      _
    $region7: #{tpu_custom_call.1} parent=1 // pred_check_branch
      %25 = sbr.rel (0) target = $region9
    $region8: #{tpu_custom_call.1} parent=1 // pred_region
      %s27 = ssub.s32 256, 256
      %28 = vsyncadd [#allocation6], %s27
      %s29 = sshll.u32 [#allocation5], 4
      %s30 = int_to_ptr.vmem [resolvable:$true] %s29
      %35 = dma.hbm_to_vmem [thread:$0]  %s1, 256, %s30, [#allocation6], 128, 128, 8
    $region9: #{tpu_custom_call.1} parent=1 // pred_fallthru
      _
    // Predicated region
    $region10: #{tpu_custom_call.1} parent=1 // pred_check
      _
    $region11: #{tpu_custom_call.1} parent=1 // pred_check_branch
      %37 = sbr.rel (0) target = $region13
    $region12: #{tpu_custom_call.1} parent=1 // pred_region
      _
    $region13: #{tpu_custom_call.1} parent=1 // pred_fallthru
      _
    // Predicated region
    $region14: #{tpu_custom_call.1} parent=1 // pred_check
      _
    $region15: #{tpu_custom_call.1} parent=1 // pred_check_branch
      %39 = sbr.rel (0) target = $region17
    $region16: #{tpu_custom_call.1} parent=1 // pred_region
      _
    $region17: #{tpu_custom_call.1} parent=1 // pred_fallthru
      _
    // Predicated region
    $region18: #{tpu_custom_call.1} parent=1 // pred_check
      _
    $region19: #{tpu_custom_call.1} parent=1 // pred_check_branch
      %41 = sbr.rel (0) target = $region21
    $region20: #{tpu_custom_call.1} parent=1 // pred_region
      %42 = dma.done [#allocation3], 256
    $region21: #{tpu_custom_call.1} parent=1 // pred_fallthru
      _
    // Predicated region
    $region22: #{tpu_custom_call.1} parent=1 // pred_check
      _
    $region23: #{tpu_custom_call.1} parent=1 // pred_check_branch
      %44 = sbr.rel (0) target = $region25
    $region24: #{tpu_custom_call.1} parent=1 // pred_region
      %45 = dma.done [#allocation6], 256
    $region25: #{tpu_custom_call.1} parent=1 // pred_fallthru
      _
    %v46 = vld [vmem:[#allocation2] sm:$0xff]
    %v47 = vld [vmem:[#allocation2 + $0x8] sm:$0xff]
    %v48 = vld [vmem:[#allocation5] sm:$0xff]
    %v49 = vld [vmem:[#allocation5 + $0x8] sm:$0xff]
    %v50 = vsub.f32 %v46, %v48
    %v51 = vsub.f32 %v47, %v49
    %vm52 = vcmask 130048
    %v53 = vsel %vm52, %v50, 0.0
    %v54 = vrot.slane %v53, 4
    %v55 = vadd.f32 %v53, %v54
    %v56 = vrot.slane %v55, 2
    %v57 = vadd.f32 %v55, %v56
    %v58 = vrot.slane %v57, 1
    %v59 = vadd.f32 %v57, %v58
    %v60 = vsel %vm52, %v51, 0.0
    %v61 = vrot.slane %v60, 4
    %v62 = vadd.f32 %v60, %v61
    %v63 = vrot.slane %v62, 2
    %v64 = vadd.f32 %v62, %v63
    %v65 = vrot.slane %v64, 1
    %v66 = vadd.f32 %v64, %v65
    %v67 = vrcp.pop 8.0
    %v68 = vmul.f32 %v59, %v67
    %v69 = vmul.f32 %v66, %v67
    %v70 = vand.u32 2147483647, %v68
    %v71 = vand.u32 2147483647, %v69
    %v72 = vld [vmem:[%s2] sm:$0x3]
    %s73 = scalar_lea.vmem %s2, 2
    %v74 = vld [vmem:[%s73] sm:$0x3]
    %s75 = scalar_lea.vmem %s2, 4
    %v76 = vld [vmem:[%s75] sm:$0x3]
    %v77 = vld [vmem:[%s3] sm:$0x1]
    %v78 = vsub.f32 %v72, 0.5
    %v79 = vmul.f32 %v78, 1000.0
    %v80 = vxor.u32 %v79, 2147483648
    %v81 = vmul.f32 %v80, 1.442695
    %v82 = vpow.pop %v81
    %v83 = vadd.f32 %v82, 1.0
    %v84 = vrcp.pop %v83
    %v85 = vmul.f32 1.0, %v84
    %vm86 = vcmp.gt.f32.partialorder %v72, 0.5
    %v88 = vrot.slane %v85, 1
    %v91 = vmul.f32 %v70, %v85
    %v92 = vmul.f32 %v71, %v88
    %v95 = vrot.slane %v92, 7
    %vm96 = vcmask 1041409
    %v97 = vsel %vm96, %v95, %v91
    %v99 = vsel %vm86, %v97, 0.0
    %vm100 = vcmask 123904
    %v101 = vsel %vm100, %v99, 0.0
    %102 = vadd.xlane.f32.xlu0 %v101
    %v103 = vpop.xlane.xlu0 %102
    %vm104 = vcmp.eq.f32.partialorder %v74, %v76
    %v105 = vsub.f32 %v72, %v76
    %v106 = vand.u32 2147483647, %v105
    %v107 = vsel %vm104, %v106, 0.0
    %v108 = vsel %vm100, %v107, 0.0
    %109 = vadd.xlane.f32.xlu0 %v108
    %v110 = vpop.xlane.xlu0 %109
    %v112 = vlaneseq
    %v113 = vshrl.u32 %v112, 7
    %v114 = vsub.s32 0, %v113
    %v115 = vrot.slane %v77, %v114
    %v117 = vmul.f32 %v85, %v115
    %v118 = vsel %vm100, %v117, 0.0
    %119 = vadd.xlane.f32.xlu0 %v118
    %v120 = vpop.xlane.xlu0 %119
    %v121 = vmul.f32 %v110, 0.5
    %v122 = vsub.f32 %v103, %v121
    %v123 = vmul.f32 %v120, 0.25
    %v124 = vsub.f32 %v122, %v123
    %v125 = vlaneseq
    %v126 = vand.u32 %v125, 127
    %vm127 = vcmp.eq.s32.totalorder %v126, 0
    %v128 = vsel %vm127, %v124, 0.0
    %vm129 = vcmp.eq.s32.totalorder %v126, 1
    %v130 = vsel %vm129, %v103, 0.0
    %v131 = vadd.f32 %v128, %v130
    %vm132 = vcmp.eq.s32.totalorder %v126, 2
    %v133 = vsel %vm132, %v110, 0.0
    %v134 = vadd.f32 %v131, %v133
    %vm135 = vcmp.eq.s32.totalorder %v126, 3
    %v136 = vsel %vm135, %v120, 0.0
    %v137 = vadd.f32 %v134, %v136
    %138 = vst [vmem:[#allocation7] sm:$0x3] %v137
    // Predicated region
    $region26: #{tpu_custom_call.1} parent=1 // pred_check
      _
    $region27: #{tpu_custom_call.1} parent=1 // pred_check_branch
      %140 = sbr.rel (0) target = $region29
    $region28: #{tpu_custom_call.1} parent=1 // pred_region
      %s142 = ssub.s32 32, 32
      %143 = vsyncadd [#allocation4], %s142
      %s145 = sshll.u32 [#allocation7], 4
      %s146 = int_to_ptr.vmem [resolvable:$true] %s145
      %148 = dma.vmem_to_hbm [thread:$0]  %s146, 32, %s4, [#allocation4]
    $region29: #{tpu_custom_call.1} parent=1 // pred_fallthru
      _
    // Predicated region
    $region30: #{tpu_custom_call.1} parent=1 // pred_check
      _
    $region31: #{tpu_custom_call.1} parent=1 // pred_check_branch
      %150 = sbr.rel (0) target = $region33
    $region32: #{tpu_custom_call.1} parent=1 // pred_region
      %151 = dma.done [#allocation4], 32
    $region33: #{tpu_custom_call.1} parent=1 // pred_fallthru
      _
    %152 = vsyncpa [#allocation3], 1
    %153 = vsyncpa [#allocation6], 1
    %154 = vsyncpa [#allocation4], 1

</llo_original>
